<compile_context>
chip_gen: v5e
topology: v5e:2x2
jax: 0.10.0
libtpu: 0.0.40
codegen_flags: <defaults>
</compile_context>

<pallas_src>
import jax
import jax.numpy as jnp
from jax import lax
from jax.experimental import pallas as pl
from jax.experimental.pallas import tpu as pltpu

LN_EPS = 1e-5  # PyTorch LayerNorm default eps


def _discriminator_kernel(x_ref, w_ref, b_ref, o_ref):
    # x_ref: (Bt, D)   w_ref: (D, OUT_PAD)   b_ref: (1, OUT_PAD)   o_ref: (Bt, OUT_PAD)
    x = x_ref[...].astype(jnp.float32)
    d = x.shape[-1]
    inv_d = 1.0 / float(d)  # compile-time constant -> VPU multiply, no divide

    # LayerNorm (no affine) over last dim — single-pass statistics:
    #   mean = E[x],  var = E[x^2] - mean^2
    # The two reductions are independent (no reduce->elementwise->reduce chain).
    s1 = jnp.sum(x, axis=-1, keepdims=True)
    s2 = jnp.sum(x * x, axis=-1, keepdims=True)
    mean = s1 * inv_d
    var = jnp.maximum(s2 * inv_d - mean * mean, 0.0)  # guard tiny negative
    x_norm = (x - mean) * lax.rsqrt(var + LN_EPS)     # rsqrt -> EUP slot

    # Linear: x_norm @ W_t + b with pre-transposed (D, OUT_PAD) weight.
    # Plain contraction -> canonical MXU RHS push, no per-step transpose.
    mxu_dtype = w_ref.dtype  # bf16 weight => bf16 MXU feed; f32 otherwise
    y = jnp.dot(x_norm.astype(mxu_dtype), w_ref[...],
                preferred_element_type=jnp.float32)
    y = y + b_ref[...].astype(jnp.float32)

    o_ref[...] = y.astype(o_ref.dtype)


def _round_up(x: int, m: int) -> int:
    return (x + m - 1) // m * m


def _choose_batch_tile(B: int) -> int:
    # Tiny batch: one step (nothing worth sharding across TensorCores).
    if B <= 256:
        return B
    # Otherwise aim for >= ~4 grid steps (v7x's 2 TCs both busy, DMA overlap),
    # with 256 <= bt <= 1024 (roofline sweet spot, bounded VMEM footprint).
    bt = _round_up(pl.cdiv(B, 4), 8)
    return max(256, min(bt, 1024))


def discriminator_forward(sent_embeds, weight, bias):
    """sent_embeds: (B, 1, D) float32 (or bf16)
       weight:      (74, D)   float32 (PyTorch nn.Linear layout)
       bias:        (74,)     float32
       returns:     (B, 74)   float32 (same dtype as sent_embeds)
    """
    x = jnp.squeeze(sent_embeds, axis=1)            # (B, D) — glue
    B, D = x.shape
    out_dim = weight.shape[0]                       # 74
    out_pad = pl.cdiv(out_dim, 128) * 128           # 128 — keep at 128 (mem-bound)

    # One-time parameter prep (in production: done at init, not per call):
    # pre-transpose to (D, out_pad) and zero-pad bias to out_pad lanes.
    w_t_pad = jnp.pad(weight.T, ((0, 0), (0, out_pad - out_dim)))     # (D, 128)
    b_pad = jnp.pad(bias, (0, out_pad - out_dim)).reshape(1, out_pad)  # (1, 128)

    bt = _choose_batch_tile(B)
    grid = (pl.cdiv(B, bt),)

    # Scoped-VMEM budget for this tiling (covers v5e's 16 MiB default when the
    # tiles grow): double-buffered x/out tiles + resident (single-buffered)
    # weight + bias, plus headroom.
    itemsize_x = jnp.dtype(x.dtype).itemsize
    itemsize_w = jnp.dtype(w_t_pad.dtype).itemsize
    needed = (2 * bt * D * itemsize_x          # x tiles (double-buffered)
              + 2 * bt * out_pad * itemsize_x  # out tiles (double-buffered)
              + D * out_pad * itemsize_w       # weight (resident)
              + out_pad * 4)                   # bias
    vmem_limit = min(max(needed + (8 << 20), 16 << 20), 64 << 20)

    cost = pl.CostEstimate(
        flops=2 * B * D * out_pad + 5 * B * D,          # matmul + LN
        transcendentals=B,                              # one rsqrt per row
        bytes_accessed=B * D * itemsize_x + D * out_pad * itemsize_w
                       + B * out_pad * itemsize_x,
    )

    out_padded = pl.pallas_call(
        _discriminator_kernel,
        out_shape=jax.ShapeDtypeStruct((B, out_pad), x.dtype),
        grid_spec=pltpu.PrefetchScalarGridSpec(
            num_scalar_prefetch=0,
            grid=grid,
            in_specs=[
                pl.BlockSpec((bt, D), lambda i: (i, 0)),            # x tile
                pl.BlockSpec((D, out_pad), lambda i: (0, 0),
                             pipeline_mode=pl.Buffered(1)),         # weight (resident)
                pl.BlockSpec((1, out_pad), lambda i: (0, 0),
                             pipeline_mode=pl.Buffered(1)),         # bias (resident)
            ],
            out_specs=pl.BlockSpec((bt, out_pad), lambda i: (i, 0)),
        ),
        compiler_params=pltpu.CompilerParams(
            dimension_semantics=("parallel",),
            vmem_limit_bytes=int(vmem_limit),
        ),
        cost_estimate=cost,
    )(x, w_t_pad, b_pad)

    return out_padded[:, :out_dim]                   # slice padding off — glue


def _reference_forward(sent_embeds, weight, bias):
    x = jnp.squeeze(sent_embeds, axis=1).astype(jnp.float32)
    mean = jnp.mean(x, axis=-1, keepdims=True)
    var = jnp.mean((x - mean) ** 2, axis=-1, keepdims=True)
    xn = (x - mean) / jnp.sqrt(var + LN_EPS)
    return xn @ weight.T + bias


if __name__ == "__main__":
    key = jax.random.PRNGKey(0)
    k_x, k_w, k_b = jax.random.split(key, 3)

    batch = 2
    d_model = 32     # config.d_model (small synthetic size)
    out_dim = 74     # fixed by the module

    sent_embeds = jax.random.normal(k_x, (batch, 1, d_model), dtype=jnp.float32)
    # Deterministic synthetic params (nn.Linear(d_model, 74) shapes).
    bound = 1.0 / (d_model ** 0.5)
    adv_weight = jax.random.uniform(k_w, (out_dim, d_model),
                                    minval=-bound, maxval=bound,
                                    dtype=jnp.float32)
    adv_bias = jax.random.uniform(k_b, (out_dim,),
                                  minval=-bound, maxval=bound,
                                  dtype=jnp.float32)

    out = discriminator_forward(sent_embeds, adv_weight, adv_bias)
    out = jax.block_until_ready(out)

    ref = _reference_forward(sent_embeds, adv_weight, adv_bias)
    assert out.shape == (batch, out_dim), out.shape
    assert jnp.allclose(out, ref, atol=1e-4, rtol=1e-4), \
        float(jnp.max(jnp.abs(out - ref)))

    print("KERNEL_OK")
</pallas_src>

<mosaic_0001>
module attributes {stable_mosaic.version = 11 : i64} {
  func.func @_discriminator_kernel(%arg0: i32, %arg1: memref<2x32xf32, #tpu.memory_space<vmem>>, %arg2: memref<32x128xf32, #tpu.memory_space<vmem>>, %arg3: memref<1x128xf32, #tpu.memory_space<vmem>>, %arg4: memref<2x128xf32, #tpu.memory_space<vmem>>) attributes {dimension_semantics = [#tpu.dimension_semantics<parallel>], iteration_bounds = array<i64: 1>, scalar_prefetch = 0 : i64, scratch_operands = 0 : i64, tpu.core_type = #tpu.core_type<tc>, window_params = [{transform_indices = @transform_0, window_bounds = array<i64: 2, 32>}, {pipeline_mode = #tpu.pipeline_mode<synchronous>, transform_indices = @transform_1, window_bounds = array<i64: 32, 128>}, {pipeline_mode = #tpu.pipeline_mode<synchronous>, transform_indices = @transform_2, window_bounds = array<i64: 1, 128>}, {transform_indices = @transform_3, window_bounds = array<i64: 2, 128>}]} {
    %c0 = arith.constant 0 : index
    %c0_0 = arith.constant 0 : index
    %0 = vector.load %arg1[%c0, %c0_0] : memref<2x32xf32, #tpu.memory_space<vmem>>, vector<2x32xf32>
    %cst = arith.constant dense<0.000000e+00> : vector<2xf32>
    %1 = vector.multi_reduction <add>, %0, %cst [1] : vector<2x32xf32> to vector<2xf32>
    %2 = vector.shape_cast %1 : vector<2xf32> to vector<2x1xf32>
    %3 = arith.mulf %0, %0 : vector<2x32xf32>
    %cst_1 = arith.constant dense<0.000000e+00> : vector<2xf32>
    %4 = vector.multi_reduction <add>, %3, %cst_1 [1] : vector<2x32xf32> to vector<2xf32>
    %5 = vector.shape_cast %4 : vector<2xf32> to vector<2x1xf32>
    %cst_2 = arith.constant 3.125000e-02 : f32
    %6 = vector.broadcast %cst_2 : f32 to vector<2x1xf32>
    %7 = arith.mulf %2, %6 : vector<2x1xf32>
    %cst_3 = arith.constant 3.125000e-02 : f32
    %8 = vector.broadcast %cst_3 : f32 to vector<2x1xf32>
    %9 = arith.mulf %5, %8 : vector<2x1xf32>
    %10 = arith.mulf %7, %7 : vector<2x1xf32>
    %11 = arith.subf %9, %10 : vector<2x1xf32>
    %cst_4 = arith.constant 0.000000e+00 : f32
    %12 = vector.broadcast %cst_4 : f32 to vector<2x1xf32>
    %13 = arith.maximumf %11, %12 : vector<2x1xf32>
    %14 = vector.broadcast %7 : vector<2x1xf32> to vector<2x32xf32>
    %15 = arith.subf %0, %14 : vector<2x32xf32>
    %cst_5 = arith.constant 9.99999974E-6 : f32
    %16 = vector.broadcast %cst_5 : f32 to vector<2x1xf32>
    %17 = arith.addf %13, %16 : vector<2x1xf32>
    %18 = math.rsqrt %17 : vector<2x1xf32>
    %19 = vector.broadcast %18 : vector<2x1xf32> to vector<2x32xf32>
    %20 = arith.mulf %15, %19 : vector<2x32xf32>
    %c0_6 = arith.constant 0 : index
    %c0_7 = arith.constant 0 : index
    %21 = vector.load %arg2[%c0_6, %c0_7] : memref<32x128xf32, #tpu.memory_space<vmem>>, vector<32x128xf32>
    %cst_8 = arith.constant dense<0.000000e+00> : vector<2x128xf32>
    %22 = tpu.matmul %20, %21, %cst_8 {dimension_numbers = #tpu.dot_dimension_numbers<[1], [0], [0], [1], [0, 0, 1, 1], [], []>} : vector<2x32xf32>, vector<32x128xf32>, vector<2x128xf32> -> vector<2x128xf32>
    %c0_9 = arith.constant 0 : index
    %c0_10 = arith.constant 0 : index
    %23 = vector.load %arg3[%c0_9, %c0_10] : memref<1x128xf32, #tpu.memory_space<vmem>>, vector<1x128xf32>
    %24 = vector.broadcast %23 : vector<1x128xf32> to vector<2x128xf32>
    %25 = arith.addf %22, %24 : vector<2x128xf32>
    %c0_11 = arith.constant 0 : index
    %c0_12 = arith.constant 0 : index
    %26 = vector.load %arg4[%c0_11, %c0_12] : memref<2x128xf32, #tpu.memory_space<vmem>>, vector<2x128xf32>
    tpu.vector_store %arg4[%c0_11, %c0_12], %25 {strides = array<i32>} : memref<2x128xf32, #tpu.memory_space<vmem>>, vector<2x128xf32>,
    return
  }
  func.func @transform_0(%arg0: i32) -> (i32, i32) {
    %c0_i32 = arith.constant 0 : i32
    %c0_i32_0 = arith.constant 0 : i32
    return %arg0, %c0_i32 : i32, i32
  }
  func.func @transform_1(%arg0: i32) -> (i32, i32) {
    %c0_i32 = arith.constant 0 : i32
    %c0_i32_0 = arith.constant 0 : i32
    %c0_i32_1 = arith.constant 0 : i32
    return %c0_i32, %c0_i32_0 : i32, i32
  }
  func.func @transform_2(%arg0: i32) -> (i32, i32) {
    %c0_i32 = arith.constant 0 : i32
    %c0_i32_0 = arith.constant 0 : i32
    %c0_i32_1 = arith.constant 0 : i32
    return %c0_i32, %c0_i32_0 : i32, i32
  }
  func.func @transform_3(%arg0: i32) -> (i32, i32) {
    %c0_i32 = arith.constant 0 : i32
    %c0_i32_0 = arith.constant 0 : i32
    return %arg0, %c0_i32 : i32, i32
  }
}

</mosaic_0001>

<llo_original>
// kernel: tpu_custom_call.1
$region0: #{tpu_custom_call.1}
  #allocation0 [shape = 'u32[]', space=smem, size = 0x4, offset = 0x4, fixed_abs, tag = 'smem constant byte address 0x4 - core index']
  #allocation1 [shape = 'u32[72,128]{1,0:T(1,128)}', space=vmem, size = 0x9000, scoped, tag = 'internal scratch']
  %s0 = inlined_call_operand.hbm [shape: f32[2,32], index: 0, kind: input, shape index: {}]
  %s1 = inlined_call_operand.hbm [shape: f32[32,128], index: 1, kind: input, shape index: {}]
  %s2 = inlined_call_operand.vmem [shape: f32[1,128], index: 2, kind: input, shape index: {}]
  %s3 = inlined_call_operand.hbm [shape: f32[2,128], index: 3, kind: output, shape index: {}]
  %s4 = sld [smem:[#allocation0]]
  $region30: #{tpu_custom_call.1} parent=0
    _
  %s6 = ssub.s32 1, %s4
  %s7 = scalar_select 0, %s6, %s4
  $region1: #{tpu_custom_call.1} parent=0
    #allocation2 [shape = 'u8[1024]{0}', space=vmem, size = 0x400, scoped, tag = 'input window, operand 0, single buffered']
    #allocation3 [shape = 's32[1]{0}', space=sflag, size = 0x4, scoped, tag = 'scoped memory for tpu_custom_call.1']
    #allocation4 [shape = 's32[1]{0}', space=sflag, size = 0x4, scoped, tag = 'scoped memory for tpu_custom_call.1']
    #allocation5 [shape = 'u8[16384]{0}', space=vmem, size = 0x4000, scoped, tag = 'input window, operand 1, single buffered']
    #allocation6 [shape = 's32[1]{0}', space=sflag, size = 0x4, scoped, tag = 'scoped memory for tpu_custom_call.1']
    #allocation7 [shape = 'u8[1024]{0}', space=vmem, size = 0x400, scoped, tag = 'output window, operand 0, single buffered']
    %8 = vsyncpa [#allocation3], 0
    %9 = vsyncpa [#allocation6], 0
    %10 = vsyncpa [#allocation4], 0
    // Predicated region
    $region2: #{tpu_custom_call.1} parent=1 // pred_check
      _
    $region3: #{tpu_custom_call.1} parent=1 // pred_check_branch
      %12 = sbr.rel (0) target = $region5
    $region4: #{tpu_custom_call.1} parent=1 // pred_region
      %14 = vsyncadd [#allocation3], 0
      %s16 = sshll.u32 %s0, 4
      %s17 = int_to_ptr.hbm [resolvable:$true] %s16
      %s18 = sshll.u32 [#allocation2], 4
      %s19 = int_to_ptr.vmem [resolvable:$true] %s18
      %21 = dma.hbm_to_vmem [thread:$0]  %s17, 32, %s19, [#allocation3]
    $region5: #{tpu_custom_call.1} parent=1 // pred_fallthru
      _
    // Predicated region
    $region6: #{tpu_custom_call.1} parent=1 // pred_check
      _
    $region7: #{tpu_custom_call.1} parent=1 // pred_check_branch
      %23 = sbr.rel (0) target = $region9
    $region8: #{tpu_custom_call.1} parent=1 // pred_region
      %25 = vsyncadd [#allocation6], 0
      %s26 = sshll.u32 %s1, 4
      %s27 = int_to_ptr.hbm [resolvable:$true] %s26
      %s28 = sshll.u32 [#allocation5], 4
      %s29 = int_to_ptr.vmem [resolvable:$true] %s28
      %34 = dma.hbm_to_vmem [thread:$0]  %s27, 512, %s29, [#allocation6], 128, 128, 8
    $region9: #{tpu_custom_call.1} parent=1 // pred_fallthru
      _
    // Predicated region
    $region10: #{tpu_custom_call.1} parent=1 // pred_check
      _
    $region11: #{tpu_custom_call.1} parent=1 // pred_check_branch
      %36 = sbr.rel (0) target = $region13
    $region12: #{tpu_custom_call.1} parent=1 // pred_region
      _
    $region13: #{tpu_custom_call.1} parent=1 // pred_fallthru
      _
    // Predicated region
    $region14: #{tpu_custom_call.1} parent=1 // pred_check
      _
    $region15: #{tpu_custom_call.1} parent=1 // pred_check_branch
      %38 = sbr.rel (0) target = $region17
    $region16: #{tpu_custom_call.1} parent=1 // pred_region
      %40 = dma.done [#allocation3], 32
    $region17: #{tpu_custom_call.1} parent=1 // pred_fallthru
      _
    // Predicated region
    $region18: #{tpu_custom_call.1} parent=1 // pred_check
      _
    $region19: #{tpu_custom_call.1} parent=1 // pred_check_branch
      %42 = sbr.rel (0) target = $region21
    $region20: #{tpu_custom_call.1} parent=1 // pred_region
      %44 = dma.done [#allocation6], 512
    $region21: #{tpu_custom_call.1} parent=1 // pred_fallthru
      _
    %v45 = vld [vmem:[#allocation2] sm:$0x3]
    %vm46 = vcmask 254976
    %v47 = vsel %vm46, %v45, 0.0
    %48 = vadd.xlane.f32.xlu0 %v47
    %v49 = vpop.xlane.xlu0 %48
    %v50 = vmul.f32 %v45, %v45
    %v51 = vsel %vm46, %v50, 0.0
    %52 = vadd.xlane.f32.xlu0 %v51
    %v53 = vpop.xlane.xlu0 %52
    %v54 = vmul.f32 %v49, 0.03125
    %v55 = vmul.f32 %v53, 0.03125
    %v56 = vmul.f32 %v54, %v54
    %v57 = vsub.f32 %v55, %v56
    %v58 = vmax.f32 %v57, 0.0
    %v59 = vsub.f32 %v45, %v54
    %v60 = vadd.f32 %v58, 1e-05
    %v61 = vrsqrt.pop %v60
    %v62 = vmul.f32 %v61, %v60
    %v63 = vmul.f32 %v62, %v61
    %v64 = vmul.f32 0.5, %v63
    %v65 = vsub.f32 1.5, %v64
    %v66 = vmul.f32 %v61, %v65
    %vm67 = vweird.f32 %v60
    %vm68 = vweird.f32 %v61
    %vm69 = vmor %vm67, %vm68
    %v70 = vsel %vm69, %v61, %v66
    %v71 = vmul.f32 %v59, %v70
    %v72 = vld [vmem:[#allocation5] sm:$0xff]
    %v73 = vld [vmem:[#allocation5 + $0x8] sm:$0xff]
    %v74 = vld [vmem:[#allocation5 + $0x10] sm:$0xff]
    %v75 = vld [vmem:[#allocation5 + $0x18] sm:$0xff]
    %v76 = vld [vmem:[%s2] sm:$0x1]
    %v78 = vperm.slane %v76, 0
    %vm80 = vcmask 261120
    %v82 = vsel %vm80, %v71, 0
    %84 = vmatpush.msra.mxu0 0.0
    %85 = vmatpush.msra.mxu0 0.0
    %86 = vmatpush.msra.mxu0 0.0
    %87 = vmatpush.msra.mxu0 0.0
    %88 = vmatpush.msra.mxu0 0.0
    %89 = vmatpush.msra.mxu0 0.0
    %90 = vmatpush.msra.mxu0 0.0
    %91 = vmatpush.msra.mxu0 0.0
    %92 = vmatpush.msra.mxu0 0.0
    %93 = vmatpush.msra.mxu0 0.0
    %94 = vmatpush.msra.mxu0 0.0
    %95 = vmatpush.msra.mxu0 0.0
    %96 = vmatpush.msra.mxu0 %v75
    %97 = vmatpush.msra.mxu0 %v74
    %98 = vmatpush.msra.mxu0 %v73
    %99 = vmatpush.msra.mxu0 %v72
    %100 = vmatmul.f32.gmra.mxu0 %v82
    %v101 = vpop.f32.mrf.mxu0
    %v102 = vadd.f32 %v78, %v101
    %103 = vdwg.mxu0
    %104 = vst [vmem:[#allocation7] sm:$0x3] %v102
    // Predicated region
    $region22: #{tpu_custom_call.1} parent=1 // pred_check
      _
    $region23: #{tpu_custom_call.1} parent=1 // pred_check_branch
      %106 = sbr.rel (0) target = $region25
    $region24: #{tpu_custom_call.1} parent=1 // pred_region
      %108 = vsyncadd [#allocation4], 0
      %s110 = sshll.u32 [#allocation7], 4
      %s111 = int_to_ptr.vmem [resolvable:$true] %s110
      %s112 = sshll.u32 %s3, 4
      %s113 = int_to_ptr.hbm [resolvable:$true] %s112
      %115 = dma.vmem_to_hbm [thread:$0]  %s111, 32, %s113, [#allocation4]
    $region25: #{tpu_custom_call.1} parent=1 // pred_fallthru
      _
    // Predicated region
    $region26: #{tpu_custom_call.1} parent=1 // pred_check
      _
    $region27: #{tpu_custom_call.1} parent=1 // pred_check_branch
      %117 = sbr.rel (0) target = $region29
    $region28: #{tpu_custom_call.1} parent=1 // pred_region
      %119 = dma.done [#allocation4], 32
    $region29: #{tpu_custom_call.1} parent=1 // pred_fallthru
      _
    %120 = vsyncpa [#allocation3], 1
    %121 = vsyncpa [#allocation6], 1
    %122 = vsyncpa [#allocation4], 1

</llo_original>
